<compile_context>
chip_gen: v5e
topology: v5e:2x2
jax: 0.10.0
libtpu: 0.0.40
codegen_flags: <defaults>
</compile_context>

<pallas_src>
import math
import jax
import jax.numpy as jnp
from jax.experimental import pallas as pl
from jax.experimental.pallas import tpu as pltpu


def _round_up(x, m):
    return ((x + m - 1) // m) * m


# ----------------------------------------------------------------------------- kernel
def ffn_kernel(x_ref, w1_ref, b1_ref, w2_ref, b2_ref, o_ref):
    # x_ref:  (tm, hidden) bf16     w1_ref: (hidden, tn) bf16   b1_ref: (1, tn) f32
    # w2_ref: (tn, hidden) bf16     b2_ref: (1, hidden)  f32    o_ref:  (tm, hidden) f32
    j = pl.program_id(1)

    # o_ref's index_map is (i, 0): the same output block stays VMEM-resident across
    # the whole j (ffn contraction) axis, so it doubles as the f32 accumulator.
    @pl.when(j == 0)
    def _():
        o_ref[...] = jnp.zeros_like(o_ref)

    # first matmul (MXU, bf16 in / f32 acc), bias + ReLU in f32 (v5e-friendly)
    h = jnp.dot(x_ref[...], w1_ref[...], preferred_element_type=jnp.float32)
    h = jnp.maximum(h + b1_ref[...], 0.0)

    # second matmul: accumulate this ffn chunk's partial contraction into the output
    o_ref[...] += jnp.dot(h.astype(w2_ref.dtype), w2_ref[...],
                          preferred_element_type=jnp.float32)

    @pl.when(j == pl.num_programs(1) - 1)
    def _():
        # bias b2 added exactly once
        o_ref[...] += b2_ref[...]


# ----------------------------------------------------------------------------- sizing
def _vmem_budget_bytes(tm, tn, hidden, act_bytes=2):
    # double-buffered inputs/outputs + in-kernel intermediate (f32 h + bf16 cast)
    x_t = 2 * tm * hidden * act_bytes
    w1_t = 2 * hidden * tn * act_bytes
    b1_t = 2 * tn * 4
    w2_t = 2 * tn * hidden * act_bytes
    b2_t = 2 * hidden * 4
    out_t = 2 * tm * hidden * 4
    h_t = tm * tn * 6          # (tm, tn) f32 intermediate + its bf16 cast (internal)
    return x_t + w1_t + b1_t + w2_t + b2_t + out_t + h_t


def _vmem_cap_bytes():
    try:
        info = pltpu.get_tpu_info()
        cap = getattr(info, "vmem_capacity_bytes", None)
        if cap:
            return int(cap)
    except Exception:
        pass
    return 64 << 20  # conservative: v7x per-TensorCore VMEM


def _default_tm(vmem_cap):
    # pick tm above the weight-DMA/MXU crossover per generation
    kind = ""
    try:
        kind = jax.devices()[0].device_kind.lower()
    except Exception:
        pass
    if "v6" in kind:
        return 1024        # v6e crossover ~650 flops/byte
    if "v5" in kind:
        return 512         # v5e crossover ~240 flops/byte
    if vmem_cap <= (64 << 20):
        return 512         # v7x (64 MiB VMEM), crossover ~310 flops/byte
    return 512


# ------------------------------------------------------------------------ param prep
def prepare_ffn_params(w1, b1, w2, b2, *, tn=512, compute_dtype=jnp.bfloat16):
    """One-time prep: bf16 cast + zero-pad ffn dim to a tile multiple.

    w1: (hidden, ffn)  b1: (ffn,) or (1, ffn)  w2: (ffn, hidden)  b2: (hidden,) or (1, hidden)
    Padded ffn columns see relu(x@0 + 0) = 0 and multiply zero rows of W2 -> exact.
    """
    hidden, ffn_dim = w1.shape
    tn_eff = min(tn, _round_up(ffn_dim, 128))
    F_pad = _round_up(ffn_dim, tn_eff)

    b1 = b1.reshape(1, ffn_dim)
    b2 = b2.reshape(1, hidden)
    if F_pad != ffn_dim:
        w1 = jnp.pad(w1, ((0, 0), (0, F_pad - ffn_dim)))
        b1 = jnp.pad(b1, ((0, 0), (0, F_pad - ffn_dim)))
        w2 = jnp.pad(w2, ((0, F_pad - ffn_dim), (0, 0)))

    return dict(
        w1=w1.astype(compute_dtype),
        b1=b1.astype(jnp.float32),
        w2=w2.astype(compute_dtype),
        b2=b2.astype(jnp.float32),
        hidden=hidden,
        ffn_dim=ffn_dim,
        ffn_pad=F_pad,
        tn_eff=tn_eff,
        compute_dtype=compute_dtype,
    )


# -------------------------------------------------------------------------- forward
def ffn_forward(x2d, params, *, tm=None):
    """x2d: (M, hidden) float32.  params: from prepare_ffn_params.  Returns (M, hidden) f32."""
    M, hidden = x2d.shape
    assert hidden == params["hidden"]
    tn_eff = params["tn_eff"]
    F_pad = params["ffn_pad"]
    compute_dtype = params["compute_dtype"]

    vmem_cap = _vmem_cap_bytes()
    if tm is None:
        tm = _default_tm(vmem_cap)

    # ---- M tile: multiple of 16 (bf16 sublane packing), shrunk to fit VMEM --------
    tm_eff = min(tm, _round_up(M, 16))
    headroom = 8 << 20
    while tm_eff > 16 and _vmem_budget_bytes(tm_eff, tn_eff, hidden) > vmem_cap - headroom:
        tm_eff = max(16, _round_up(tm_eff // 2, 16))
    M_pad = _round_up(M, tm_eff)

    # Give the "parallel" M axis >= 2 tiles so v7x's second TensorCore has work.
    if M_pad // tm_eff == 1 and tm_eff > 16:
        tm_eff = max(16, _round_up(tm_eff // 2, 16))
        M_pad = _round_up(M, tm_eff)

    # ---- activations: bf16 for the MXU (padded rows are sliced off at the end) ----
    if M_pad != M:
        x2d = jnp.pad(x2d, ((0, M_pad - M), (0, 0)))
    xc = x2d.astype(compute_dtype)

    grid = (M_pad // tm_eff, F_pad // tn_eff)  # (parallel M, arbitrary ffn) - ffn LAST
    num_m_tiles = grid[0]

    cost = pl.CostEstimate(
        flops=4 * M_pad * hidden * F_pad,
        transcendentals=0,
        bytes_accessed=(M_pad * hidden * (2 + 4)                 # x in (bf16) + out (f32)
                        + num_m_tiles * 2 * hidden * F_pad * 2   # W1+W2 re-streamed per M tile
                        + (F_pad + hidden) * 4),                 # biases
    )

    budget = _vmem_budget_bytes(tm_eff, tn_eff, hidden)
    vmem_limit = int(min(vmem_cap - (4 << 20),
                         max(32 << 20, budget + (4 << 20))))

    # TODO(synk): downstream permitting, emit the output in bf16 (cast in finalize with a
    # separate f32 accumulator scratch) to halve output VMEM/HBM traffic on v7x.
    out = pl.pallas_call(
        ffn_kernel,
        out_shape=jax.ShapeDtypeStruct((M_pad, hidden), jnp.float32),
        grid_spec=pltpu.PrefetchScalarGridSpec(
            num_scalar_prefetch=0,
            grid=grid,
            in_specs=[
                pl.BlockSpec((tm_eff, hidden), lambda i, j: (i, 0)),   # x tile (resident over j)
                pl.BlockSpec((hidden, tn_eff), lambda i, j: (0, j)),   # W1 chunk
                pl.BlockSpec((1, tn_eff), lambda i, j: (0, j)),        # b1 chunk
                pl.BlockSpec((tn_eff, hidden), lambda i, j: (j, 0)),   # W2 chunk
                pl.BlockSpec((1, hidden), lambda i, j: (0, 0)),        # b2
            ],
            out_specs=pl.BlockSpec((tm_eff, hidden), lambda i, j: (i, 0)),
        ),
        compiler_params=pltpu.CompilerParams(
            dimension_semantics=("parallel", "arbitrary"),
            vmem_limit_bytes=vmem_limit,
        ),
        cost_estimate=cost,
    )(xc, params["w1"], params["b1"], params["w2"], params["b2"])

    return out[:M]


# ----------------------------------------------------------------------------- init
def init_ffn_params(key, hidden_size, ffn_dim):
    """Deterministic init matching nn.Linear's default U(-1/sqrt(fan_in), 1/sqrt(fan_in))."""
    k1, k2, k3, k4 = jax.random.split(key, 4)
    bound1 = 1.0 / math.sqrt(hidden_size)
    bound2 = 1.0 / math.sqrt(ffn_dim)
    # stored transposed relative to PyTorch: W1 [hidden, ffn], W2 [ffn, hidden]
    w1 = jax.random.uniform(k1, (hidden_size, ffn_dim), jnp.float32, -bound1, bound1)
    b1 = jax.random.uniform(k2, (1, ffn_dim), jnp.float32, -bound1, bound1)
    w2 = jax.random.uniform(k3, (ffn_dim, hidden_size), jnp.float32, -bound2, bound2)
    b2 = jax.random.uniform(k4, (1, hidden_size), jnp.float32, -bound2, bound2)
    return w1, b1, w2, b2


if __name__ == "__main__":
    batch, seq, hidden_size, ffn_dim = 2, 8, 32, 64

    key = jax.random.PRNGKey(0)
    kx, kp = jax.random.split(key)

    x = jax.random.normal(kx, (batch, seq, hidden_size), jnp.float32)
    w1, b1, w2, b2 = init_ffn_params(kp, hidden_size, ffn_dim)

    # one-time weight prep (bf16 cast + ffn-dim padding) -- outside the forward path
    params = prepare_ffn_params(w1, b1, w2, b2)

    # flatten (batch, seq, hidden) -> (batch*seq, hidden) for the kernel
    x2d = x.reshape(batch * seq, hidden_size)
    out2d = ffn_forward(x2d, params)
    out = out2d.reshape(batch, seq, hidden_size)
    jax.block_until_ready(out)

    # reference check (pure JAX, matching the kernel's bf16-matmul / f32-accumulate path)
    xb = x2d.astype(jnp.bfloat16)
    w1b = w1.astype(jnp.bfloat16)
    w2b = w2.astype(jnp.bfloat16)
    h_ref = jnp.maximum(
        jnp.dot(xb, w1b, preferred_element_type=jnp.float32) + b1, 0.0)
    ref2d = jnp.dot(h_ref.astype(jnp.bfloat16), w2b,
                    preferred_element_type=jnp.float32) + b2
    ref = ref2d.reshape(batch, seq, hidden_size)
    assert jnp.allclose(out, ref, atol=2e-3, rtol=2e-3)

    # sanity check against the full-f32 module semantics (bf16 rounding tolerance)
    ref_f32 = (jnp.maximum(x2d @ w1 + b1, 0.0) @ w2 + b2).reshape(batch, seq, hidden_size)
    assert jnp.allclose(out, ref_f32, atol=5e-2, rtol=5e-2)

    print("KERNEL_OK")
</pallas_src>

<mosaic_0001>
module attributes {stable_mosaic.version = 11 : i64} {
  func.func @ffn_kernel(%arg0: i32, %arg1: i32, %arg2: memref<16x32xbf16, #tpu.memory_space<vmem>>, %arg3: memref<32x128xbf16, #tpu.memory_space<vmem>>, %arg4: memref<1x128xf32, #tpu.memory_space<vmem>>, %arg5: memref<128x32xbf16, #tpu.memory_space<vmem>>, %arg6: memref<1x32xf32, #tpu.memory_space<vmem>>, %arg7: memref<16x32xf32, #tpu.memory_space<vmem>>) attributes {dimension_semantics = [#tpu.dimension_semantics<parallel>, #tpu.dimension_semantics<arbitrary>], iteration_bounds = array<i64: 1, 1>, scalar_prefetch = 0 : i64, scratch_operands = 0 : i64, tpu.core_type = #tpu.core_type<tc>, window_params = [{transform_indices = @transform_0, window_bounds = array<i64: 16, 32>}, {transform_indices = @transform_1, window_bounds = array<i64: 32, 128>}, {transform_indices = @transform_2, window_bounds = array<i64: 1, 128>}, {transform_indices = @transform_3, window_bounds = array<i64: 128, 32>}, {pipeline_mode = #tpu.pipeline_mode<synchronous>, transform_indices = @transform_4, window_bounds = array<i64: 1, 32>}, {transform_indices = @transform_5, window_bounds = array<i64: 16, 32>}]} {
    %c0_i32 = arith.constant 0 : i32
    %0 = arith.cmpi eq, %arg1, %c0_i32 : i32
    %1 = arith.extui %0 : i1 to i32
    %c0_i32_0 = arith.constant 0 : i32
    %2 = arith.cmpi ne, %1, %c0_i32_0 : i32
    scf.if %2 {
      %cst_16 = arith.constant 0.000000e+00 : f32
      %20 = vector.broadcast %cst_16 : f32 to vector<16x32xf32>
      %c0_17 = arith.constant 0 : index
      %c0_18 = arith.constant 0 : index
      %21 = vector.load %arg7[%c0_17, %c0_18] : memref<16x32xf32, #tpu.memory_space<vmem>>, vector<16x32xf32>
      tpu.vector_store %arg7[%c0_17, %c0_18], %20 {strides = array<i32>} : memref<16x32xf32, #tpu.memory_space<vmem>>, vector<16x32xf32>,
    } else {
    }
    %c0 = arith.constant 0 : index
    %c0_1 = arith.constant 0 : index
    %3 = vector.load %arg2[%c0, %c0_1] : memref<16x32xbf16, #tpu.memory_space<vmem>>, vector<16x32xbf16>
    %c0_2 = arith.constant 0 : index
    %c0_3 = arith.constant 0 : index
    %4 = vector.load %arg3[%c0_2, %c0_3] : memref<32x128xbf16, #tpu.memory_space<vmem>>, vector<32x128xbf16>
    %cst = arith.constant dense<0.000000e+00> : vector<16x128xf32>
    %5 = tpu.matmul %3, %4, %cst {dimension_numbers = #tpu.dot_dimension_numbers<[1], [0], [0], [1], [0, 0, 1, 1], [], []>} : vector<16x32xbf16>, vector<32x128xbf16>, vector<16x128xf32> -> vector<16x128xf32>
    %c0_4 = arith.constant 0 : index
    %c0_5 = arith.constant 0 : index
    %6 = vector.load %arg4[%c0_4, %c0_5] : memref<1x128xf32, #tpu.memory_space<vmem>>, vector<1x128xf32>
    %7 = vector.broadcast %6 : vector<1x128xf32> to vector<16x128xf32>
    %8 = arith.addf %5, %7 : vector<16x128xf32>
    %cst_6 = arith.constant 0.000000e+00 : f32
    %9 = vector.broadcast %cst_6 : f32 to vector<16x128xf32>
    %10 = arith.maximumf %8, %9 : vector<16x128xf32>
    %c0_7 = arith.constant 0 : index
    %c0_8 = arith.constant 0 : index
    %11 = vector.load %arg7[%c0_7, %c0_8] : memref<16x32xf32, #tpu.memory_space<vmem>>, vector<16x32xf32>
    %12 = arith.truncf %10 : vector<16x128xf32> to vector<16x128xbf16>
    %c0_9 = arith.constant 0 : index
    %c0_10 = arith.constant 0 : index
    %13 = vector.load %arg5[%c0_9, %c0_10] : memref<128x32xbf16, #tpu.memory_space<vmem>>, vector<128x32xbf16>
    %cst_11 = arith.constant dense<0.000000e+00> : vector<16x32xf32>
    %14 = tpu.matmul %12, %13, %cst_11 {dimension_numbers = #tpu.dot_dimension_numbers<[1], [0], [0], [1], [0, 0, 1, 1], [], []>} : vector<16x128xbf16>, vector<128x32xbf16>, vector<16x32xf32> -> vector<16x32xf32>
    %15 = arith.addf %11, %14 : vector<16x32xf32>
    %c0_12 = arith.constant 0 : index
    %c0_13 = arith.constant 0 : index
    %16 = vector.load %arg7[%c0_12, %c0_13] : memref<16x32xf32, #tpu.memory_space<vmem>>, vector<16x32xf32>
    tpu.vector_store %arg7[%c0_12, %c0_13], %15 {strides = array<i32>} : memref<16x32xf32, #tpu.memory_space<vmem>>, vector<16x32xf32>,
    %c0_i32_14 = arith.constant 0 : i32
    %17 = arith.cmpi eq, %arg1, %c0_i32_14 : i32
    %18 = arith.extui %17 : i1 to i32
    %c0_i32_15 = arith.constant 0 : i32
    %19 = arith.cmpi ne, %18, %c0_i32_15 : i32
    scf.if %19 {
      %c0_16 = arith.constant 0 : index
      %c0_17 = arith.constant 0 : index
      %20 = vector.load %arg7[%c0_16, %c0_17] : memref<16x32xf32, #tpu.memory_space<vmem>>, vector<16x32xf32>
      %c0_18 = arith.constant 0 : index
      %c0_19 = arith.constant 0 : index
      %21 = vector.load %arg6[%c0_18, %c0_19] : memref<1x32xf32, #tpu.memory_space<vmem>>, vector<1x32xf32>
      %22 = vector.broadcast %21 : vector<1x32xf32> to vector<16x32xf32>
      %23 = arith.addf %20, %22 : vector<16x32xf32>
      %c0_20 = arith.constant 0 : index
      %c0_21 = arith.constant 0 : index
      %24 = vector.load %arg7[%c0_20, %c0_21] : memref<16x32xf32, #tpu.memory_space<vmem>>, vector<16x32xf32>
      tpu.vector_store %arg7[%c0_20, %c0_21], %23 {strides = array<i32>} : memref<16x32xf32, #tpu.memory_space<vmem>>, vector<16x32xf32>,
    } else {
    }
    return
  }
  func.func @transform_0(%arg0: i32, %arg1: i32) -> (i32, i32) {
    %c0_i32 = arith.constant 0 : i32
    %c0_i32_0 = arith.constant 0 : i32
    return %arg0, %c0_i32 : i32, i32
  }
  func.func @transform_1(%arg0: i32, %arg1: i32) -> (i32, i32) {
    %c0_i32 = arith.constant 0 : i32
    %c0_i32_0 = arith.constant 0 : i32
    return %c0_i32, %arg1 : i32, i32
  }
  func.func @transform_2(%arg0: i32, %arg1: i32) -> (i32, i32) {
    %c0_i32 = arith.constant 0 : i32
    %c0_i32_0 = arith.constant 0 : i32
    return %c0_i32, %arg1 : i32, i32
  }
  func.func @transform_3(%arg0: i32, %arg1: i32) -> (i32, i32) {
    %c0_i32 = arith.constant 0 : i32
    %c0_i32_0 = arith.constant 0 : i32
    return %arg1, %c0_i32 : i32, i32
  }
  func.func @transform_4(%arg0: i32, %arg1: i32) -> (i32, i32) {
    %c0_i32 = arith.constant 0 : i32
    %c0_i32_0 = arith.constant 0 : i32
    %c0_i32_1 = arith.constant 0 : i32
    return %c0_i32, %c0_i32_0 : i32, i32
  }
  func.func @transform_5(%arg0: i32, %arg1: i32) -> (i32, i32) {
    %c0_i32 = arith.constant 0 : i32
    %c0_i32_0 = arith.constant 0 : i32
    return %arg0, %c0_i32 : i32, i32
  }
}

</mosaic_0001>

<llo_original>
// kernel: tpu_custom_call.1
$region0: #{tpu_custom_call.1}
  #allocation0 [shape = 'u32[]', space=smem, size = 0x4, offset = 0x4, fixed_abs, tag = 'smem constant byte address 0x4 - core index']
  #allocation1 [shape = 'u32[72,128]{1,0:T(1,128)}', space=vmem, size = 0x9000, scoped, tag = 'internal scratch']
  %s0 = inlined_call_operand.vmem [shape: bf16[16,32], index: 0, kind: input, shape index: {}]
  %s1 = inlined_call_operand.vmem [shape: bf16[32,128], index: 1, kind: input, shape index: {}]
  %s2 = inlined_call_operand.vmem [shape: f32[1,128], index: 2, kind: input, shape index: {}]
  %s3 = inlined_call_operand.vmem [shape: bf16[128,32], index: 3, kind: input, shape index: {}]
  %s4 = inlined_call_operand.vmem [shape: f32[1,32], index: 4, kind: input, shape index: {}]
  %s5 = inlined_call_operand.hbm [shape: f32[16,32], index: 5, kind: output, shape index: {}]
  %s6 = sld [smem:[#allocation0]]
  $region38: #{tpu_custom_call.1} parent=0
    _
  %s8 = ssub.s32 1, %s6
  %s9 = scalar_select 0, %s8, %s6
  $region1: #{tpu_custom_call.1} parent=0
    #allocation2 [shape = 'u8[8192]{0}', space=vmem, size = 0x2000, scoped, tag = 'output window, operand 0, single buffered']
    #allocation3 [shape = 's32[1]{0}', space=sflag, size = 0x4, scoped, tag = 'scoped memory for tpu_custom_call.1']
    %10 = vsyncpa [#allocation3], 0
    // Predicated region
    $region2: #{tpu_custom_call.1} parent=1 // pred_check
      _
    $region3: #{tpu_custom_call.1} parent=1 // pred_check_branch
      %12 = sbr.rel (0) target = $region5
    $region4: #{tpu_custom_call.1} parent=1 // pred_region
      _
    $region5: #{tpu_custom_call.1} parent=1 // pred_fallthru
      _
    // Predicated region
    $region6: #{tpu_custom_call.1} parent=1 // pred_check
      _
    $region7: #{tpu_custom_call.1} parent=1 // pred_check_branch
      %14 = sbr.rel (0) target = $region9
    $region8: #{tpu_custom_call.1} parent=1 // pred_region
      _
    $region9: #{tpu_custom_call.1} parent=1 // pred_fallthru
      _
    // Predicated region
    $region10: #{tpu_custom_call.1} parent=1 // pred_check
      _
    $region11: #{tpu_custom_call.1} parent=1 // pred_check_branch
      %16 = sbr.rel (0) target = $region13
    $region12: #{tpu_custom_call.1} parent=1 // pred_region
      _
    $region13: #{tpu_custom_call.1} parent=1 // pred_fallthru
      _
    // Predicated region
    $region14: #{tpu_custom_call.1} parent=1 // pred_check
      _
    $region15: #{tpu_custom_call.1} parent=1 // pred_check_branch
      %18 = sbr.rel (0) target = $region17
    $region16: #{tpu_custom_call.1} parent=1 // pred_region
      _
    $region17: #{tpu_custom_call.1} parent=1 // pred_fallthru
      _
    // Predicated region
    $region18: #{tpu_custom_call.1} parent=1 // pred_check
      _
    $region19: #{tpu_custom_call.1} parent=1 // pred_check_branch
      %20 = sbr.rel (0) target = $region21
    $region20: #{tpu_custom_call.1} parent=1 // pred_region
      _
    $region21: #{tpu_custom_call.1} parent=1 // pred_fallthru
      _
    %p22 = scmp.eq.s32.totalorder 0, 0
    // Predicated region
    $region22: #{tpu_custom_call.1} parent=1 // pred_check
      %p23 = pneg %p22
    $region23: #{tpu_custom_call.1} parent=1 // pred_check_branch
      %25 = sbr.rel (%p23) target = $region25
    $region24: #{tpu_custom_call.1} parent=1 // pred_region
      %vm26 = vcmask 261120
      %27 = vst.msk [vmem:[#allocation2] sm:$0xff] %vm26, 0.0
      %28 = vst.msk [vmem:[#allocation2 + $0x8] sm:$0xff] %vm26, 0.0
    $region25: #{tpu_custom_call.1} parent=1 // pred_fallthru
      _
    %v29 = vld [vmem:[%s0] sm:$0xf]
    %v30 = vld [vmem:[%s0 + $0x4] sm:$0xf]
    %v31 = vld [vmem:[%s1] sm:$0xf]
    %v32 = vld [vmem:[%s1 + $0x4] sm:$0xf]
    %v33 = vld [vmem:[%s1 + $0x8] sm:$0xf]
    %v34 = vld [vmem:[%s1 + $0xc] sm:$0xf]
    %v35 = vld [vmem:[%s2] sm:$0x1]
    %v37 = vperm.slane %v35, 0
    %v41 = vunpack.c.l.b16 %v29
    %v42 = vunpack.c.l.b16 %v30
    %v43 = vpack.c.b16 %v42, %v41
    %v48 = vunpack.c.l.b16 %v31
    %v49 = vunpack.c.l.b16 %v32
    %v50 = vunpack.c.l.b16 %v33
    %v51 = vunpack.c.l.b16 %v34
    %v52 = vpack.c.b16 %v49, %v48
    %v53 = vpack.c.b16 %v51, %v50
    %vm56 = vcmask 261120
    %v58 = vsel %vm56, %v43, 0
    %60 = vmatpush.bf16.msra.mxu0 0
    %61 = vmatpush.bf16.msra.mxu0 0
    %62 = vmatpush.bf16.msra.mxu0 0
    %63 = vmatpush.bf16.msra.mxu0 0
    %64 = vmatpush.bf16.msra.mxu0 0
    %65 = vmatpush.bf16.msra.mxu0 0
    %66 = vmatpush.bf16.msra.mxu0 %v53
    %67 = vmatpush.bf16.msra.mxu0 %v52
    %68 = vmatmul.bf16.gmra.mxu0 %v58
    %v69 = vpop.f32.mrf.mxu0
    %v70 = vadd.f32 %v37, %v69
    %v71 = vpop.f32.mrf.mxu0
    %v72 = vadd.f32 %v37, %v71
    %73 = vdwg.mxu0
    %v74 = vmax.f32 %v70, 0.0
    %v75 = vmax.f32 %v72, 0.0
    %v76 = vld [vmem:[#allocation2] sm:$0xff]
    %v77 = vld [vmem:[#allocation2 + $0x8] sm:$0xff]
    %v78 = vpack.c.bf16 %v75, %v74
    %v79 = vld [vmem:[%s3] sm:$0xf]
    %v80 = vld [vmem:[%s3 + $0x4] sm:$0xf]
    %v81 = vld [vmem:[%s3 + $0x8] sm:$0xf]
    %v82 = vld [vmem:[%s3 + $0xc] sm:$0xf]
    %v83 = vld [vmem:[%s3 + $0x10] sm:$0xf]
    %v84 = vld [vmem:[%s3 + $0x14] sm:$0xf]
    %v85 = vld [vmem:[%s3 + $0x18] sm:$0xf]
    %v86 = vld [vmem:[%s3 + $0x1c] sm:$0xf]
    %v87 = vld [vmem:[%s3 + $0x20] sm:$0xf]
    %v88 = vld [vmem:[%s3 + $0x24] sm:$0xf]
    %v89 = vld [vmem:[%s3 + $0x28] sm:$0xf]
    %v90 = vld [vmem:[%s3 + $0x2c] sm:$0xf]
    %v91 = vld [vmem:[%s3 + $0x30] sm:$0xf]
    %v92 = vld [vmem:[%s3 + $0x34] sm:$0xf]
    %v93 = vld [vmem:[%s3 + $0x38] sm:$0xf]
    %v94 = vld [vmem:[%s3 + $0x3c] sm:$0xf]
    %v111 = vunpack.c.l.b16 %v79
    %v112 = vunpack.c.l.b16 %v80
    %v113 = vunpack.c.l.b16 %v81
    %v114 = vunpack.c.l.b16 %v82
    %v115 = vunpack.c.l.b16 %v83
    %v116 = vunpack.c.l.b16 %v84
    %v117 = vunpack.c.l.b16 %v85
    %v118 = vunpack.c.l.b16 %v86
    %v119 = vunpack.c.l.b16 %v87
    %v120 = vunpack.c.l.b16 %v88
    %v121 = vunpack.c.l.b16 %v89
    %v122 = vunpack.c.l.b16 %v90
    %v123 = vunpack.c.l.b16 %v91
    %v124 = vunpack.c.l.b16 %v92
    %v125 = vunpack.c.l.b16 %v93
    %v126 = vunpack.c.l.b16 %v94
    %v127 = vpack.c.b16 %v112, %v111
    %v128 = vpack.c.b16 %v114, %v113
    %v129 = vpack.c.b16 %v116, %v115
    %v130 = vpack.c.b16 %v118, %v117
    %v131 = vpack.c.b16 %v120, %v119
    %v132 = vpack.c.b16 %v122, %v121
    %v133 = vpack.c.b16 %v124, %v123
    %v134 = vpack.c.b16 %v126, %v125
    %143 = vmatpush.bf16.msra.mxu0 %v134
    %144 = vmatpush.bf16.msra.mxu0 %v133
    %145 = vmatpush.bf16.msra.mxu0 %v132
    %146 = vmatpush.bf16.msra.mxu0 %v131
    %147 = vmatpush.bf16.msra.mxu0 %v130
    %148 = vmatpush.bf16.msra.mxu0 %v129
    %149 = vmatpush.bf16.msra.mxu0 %v128
    %150 = vmatpush.bf16.msra.mxu0 %v127
    %151 = vmatmul.bf16.gmra.mxu0 %v78
    %v152 = vpop.f32.mrf.mxu0
    %v153 = vadd.f32 0.0, %v152
    %v154 = vpop.f32.mrf.mxu0
    %v155 = vadd.f32 0.0, %v154
    %156 = vdwg.mxu0
    %v157 = vadd.f32 %v76, %v153
    %v158 = vadd.f32 %v77, %v155
    %159 = vst.msk [vmem:[#allocation2] sm:$0xff] %vm56, %v157
    %160 = vst.msk [vmem:[#allocation2 + $0x8] sm:$0xff] %vm56, %v158
    // Predicated region
    $region26: #{tpu_custom_call.1} parent=1 // pred_check
      %p161 = pneg %p22
    $region27: #{tpu_custom_call.1} parent=1 // pred_check_branch
      %163 = sbr.rel (%p161) target = $region29
    $region28: #{tpu_custom_call.1} parent=1 // pred_region
      %v164 = vld [vmem:[#allocation2] sm:$0xff]
      %v165 = vld [vmem:[#allocation2 + $0x8] sm:$0xff]
      %v166 = vld [vmem:[%s4] sm:$0x1]
      %v168 = vperm.slane %v166, 0
      %v170 = vadd.f32 %v164, %v168
      %v171 = vadd.f32 %v165, %v168
      %172 = vst.msk [vmem:[#allocation2] sm:$0xff] %vm56, %v170
      %173 = vst.msk [vmem:[#allocation2 + $0x8] sm:$0xff] %vm56, %v171
    $region29: #{tpu_custom_call.1} parent=1 // pred_fallthru
      _
    // Predicated region
    $region30: #{tpu_custom_call.1} parent=1 // pred_check
      _
    $region31: #{tpu_custom_call.1} parent=1 // pred_check_branch
      %175 = sbr.rel (0) target = $region33
    $region32: #{tpu_custom_call.1} parent=1 // pred_region
      %177 = vsyncadd [#allocation3], 0
      %s178 = sshll.u32 [#allocation2], 4
      %s179 = int_to_ptr.vmem [resolvable:$true] %s178
      %s180 = sshll.u32 %s5, 4
      %s181 = int_to_ptr.hbm [resolvable:$true] %s180
      %186 = dma.vmem_to_hbm [thread:$0]  %s179, 256, %s181, [#allocation3], 128, 128, 8
    $region33: #{tpu_custom_call.1} parent=1 // pred_fallthru
      _
    // Predicated region
    $region34: #{tpu_custom_call.1} parent=1 // pred_check
      _
    $region35: #{tpu_custom_call.1} parent=1 // pred_check_branch
      %188 = sbr.rel (0) target = $region37
    $region36: #{tpu_custom_call.1} parent=1 // pred_region
      %190 = dma.done [#allocation3], 256
    $region37: #{tpu_custom_call.1} parent=1 // pred_fallthru
      _
    %191 = vsyncpa [#allocation3], 1

</llo_original>
